<compile_context>
chip_gen: v6e
topology: v6e:2x2x1
jax: 0.10.0
libtpu: 0.0.40
codegen_flags: <defaults>
</compile_context>

<pallas_src>
import math
import functools

import jax
import jax.numpy as jnp
from jax.experimental import pallas as pl
from jax.experimental.pallas import tpu as pltpu


def _round_down(v, m):
    return (v // m) * m


def _posenc_kernel(x_ref, pe_ref, o_ref, *, scale):
    # Pure VPU elementwise op: one mul + one add per element, computed in f32.
    x = x_ref[...].astype(jnp.float32)
    o_ref[...] = (x * scale + pe_ref[...]).astype(o_ref.dtype)


def make_pe_table(d_model, max_seq_len=80):
    """Sin/cos table matching the PyTorch reference loop exactly (float32)."""
    pos = jnp.arange(max_seq_len, dtype=jnp.float32)[:, None]
    j = jnp.arange(d_model, dtype=jnp.float32)[None, :]
    angle = pos / jnp.power(10000.0, 2.0 * j / d_model)
    even = (jnp.arange(d_model)[None, :] % 2) == 0
    return jnp.where(even, jnp.sin(angle), jnp.cos(angle)).astype(jnp.float32)


@functools.partial(jax.jit, static_argnames=("tb_cap", "tc_cap"))
def positional_encoder(x, pe_table, *, tb_cap=256, tc_cap=None):
    """x: [B, S, d_model]; pe_table: [max_seq_len, d_model], max_seq_len >= S."""
    B, S, d_model = x.shape
    scale = math.sqrt(d_model)
    itemsize = jnp.dtype(x.dtype).itemsize

    # Dtype-aware lane cap: ~4 MiB per (256 x tc_cap) tile regardless of dtype.
    if tc_cap is None:
        tc_cap = 4096 * max(1, 4 // itemsize)

    # Small-batch layout: (B*S, d_model) is both sublane- and lane-dense.
    use_row_layout = (B < 8) and (d_model % 128 == 0) and (S % 8 == 0)

    if use_row_layout:
        R = B * S
        x2 = x.reshape(R, d_model)
        pe2 = pe_table[:S].astype(jnp.float32)            # (S, d_model), f32

        # Row tile: a multiple of 8 that divides S, so a block never straddles
        # two batch rows and the pe block index is simply i % (S // tr).
        tr = 8
        for cand in range(_round_down(min(S, 512), 8), 7, -8):
            if S % cand == 0:
                tr = cand
                break
        tc = max(min(_round_down(tc_cap, 128), d_model), 128)

        # Guarantee >=2 blocks so v7x can use both TensorCores.
        if pl.cdiv(R, tr) * pl.cdiv(d_model, tc) == 1:
            if tc % 256 == 0:
                tc //= 2
            elif tr % 16 == 0:
                tr //= 2

        n_seq_blocks = S // tr
        grid = (pl.cdiv(R, tr), pl.cdiv(d_model, tc))
        in_specs = [
            pl.BlockSpec((tr, tc), lambda i, j: (i, j)),
            pl.BlockSpec((tr, tc), lambda i, j: (i % n_seq_blocks, j)),
        ]
        out_specs = pl.BlockSpec((tr, tc), lambda i, j: (i, j))
        out_shape2 = jax.ShapeDtypeStruct((R, d_model), x.dtype)
        block_bytes = tr * tc * (2 * itemsize + 4)        # x + out + pe(f32)
        pe_bytes = grid[0] * grid[1] * tr * tc * 4
    else:
        # Default layout: lane-dense flattening, last dim = S*d_model.
        N = S * d_model
        x2 = x.reshape(B, N)
        pe2 = pe_table[:S].reshape(1, N).astype(jnp.float32)

        if B >= 8:
            tb = max(8, min(_round_down(tb_cap, 8), _round_down(B, 8)))
        else:
            tb = B                       # tiny batch: full (sub-8) extent
        if N >= 128:
            tc = max(min(_round_down(tc_cap, 128), _round_down(N, 128)), 128)
        else:
            tc = N                       # tiny row: full (sub-128) extent

        # Guarantee >=2 blocks so v7x can use both TensorCores.
        if pl.cdiv(B, tb) * pl.cdiv(N, tc) == 1:
            if tc % 256 == 0:
                tc //= 2
            elif tb % 16 == 0:
                tb //= 2

        grid = (pl.cdiv(B, tb), pl.cdiv(N, tc))
        in_specs = [
            pl.BlockSpec((tb, tc), lambda i, j: (i, j)),
            pl.BlockSpec((1, tc), lambda i, j: (0, j)),   # broadcast over batch
        ]
        out_specs = pl.BlockSpec((tb, tc), lambda i, j: (i, j))
        out_shape2 = jax.ShapeDtypeStruct((B, N), x.dtype)
        block_bytes = tb * tc * 2 * itemsize + tc * 4     # x + out + pe(f32)
        pe_bytes = grid[0] * grid[1] * tc * 4             # pe re-read / row block

    total_elems = B * S * d_model
    cost = pl.CostEstimate(
        flops=2 * total_elems,                 # one mul + one add per element
        transcendentals=0,
        bytes_accessed=2 * total_elems * itemsize + pe_bytes,
    )

    # Explicit, tile-derived scoped-VMEM limit (double-buffered blocks + slack),
    # clamped well under v7x's 64 MiB physical VMEM.
    vmem_limit = int(min(max(2 * block_bytes + (4 << 20), 16 << 20), 40 << 20))

    out = pl.pallas_call(
        functools.partial(_posenc_kernel, scale=scale),
        out_shape=out_shape2,
        grid_spec=pltpu.PrefetchScalarGridSpec(
            num_scalar_prefetch=0,
            grid=grid,
            in_specs=in_specs,
            out_specs=out_specs,
        ),
        compiler_params=pltpu.CompilerParams(
            dimension_semantics=("parallel", "parallel"),
            vmem_limit_bytes=vmem_limit,
        ),
        cost_estimate=cost,
    )(x2, pe2)
    return out.reshape(B, S, d_model)


if __name__ == "__main__":
    d_model, max_seq_len = 32, 80
    B, S = 2, 8

    key = jax.random.PRNGKey(0)
    x = jax.random.normal(key, (B, S, d_model), jnp.float32)
    pe_table = make_pe_table(d_model, max_seq_len)

    out = jax.block_until_ready(positional_encoder(x, pe_table))

    # Pure-JAX reference (identical math to the PyTorch forward).
    ref = x * math.sqrt(d_model) + pe_table[:S][None, :, :]
    assert out.shape == (B, S, d_model)
    assert jnp.allclose(out, ref, atol=1e-6, rtol=1e-6)

    print("KERNEL_OK")
</pallas_src>

<mosaic_0001>
module attributes {stable_mosaic.version = 11 : i64} {
  func.func @_posenc_kernel(%arg0: i32, %arg1: i32, %arg2: memref<2x128xf32, #tpu.memory_space<vmem>>, %arg3: memref<1x128xf32, #tpu.memory_space<vmem>>, %arg4: memref<2x128xf32, #tpu.memory_space<vmem>>) attributes {dimension_semantics = [#tpu.dimension_semantics<parallel>, #tpu.dimension_semantics<parallel>], iteration_bounds = array<i64: 1, 2>, scalar_prefetch = 0 : i64, scratch_operands = 0 : i64, tpu.core_type = #tpu.core_type<tc>, window_params = [{transform_indices = @transform_0, window_bounds = array<i64: 2, 128>}, {transform_indices = @transform_1, window_bounds = array<i64: 1, 128>}, {transform_indices = @transform_2, window_bounds = array<i64: 2, 128>}]} {
    %c0 = arith.constant 0 : index
    %c0_0 = arith.constant 0 : index
    %0 = vector.load %arg2[%c0, %c0_0] : memref<2x128xf32, #tpu.memory_space<vmem>>, vector<2x128xf32>
    %cst = arith.constant 5.65685415 : f32
    %1 = vector.broadcast %cst : f32 to vector<2x128xf32>
    %2 = arith.mulf %0, %1 : vector<2x128xf32>
    %c0_1 = arith.constant 0 : index
    %c0_2 = arith.constant 0 : index
    %3 = vector.load %arg3[%c0_1, %c0_2] : memref<1x128xf32, #tpu.memory_space<vmem>>, vector<1x128xf32>
    %4 = vector.broadcast %3 : vector<1x128xf32> to vector<2x128xf32>
    %5 = arith.addf %2, %4 : vector<2x128xf32>
    %c0_3 = arith.constant 0 : index
    %c0_4 = arith.constant 0 : index
    %6 = vector.load %arg4[%c0_3, %c0_4] : memref<2x128xf32, #tpu.memory_space<vmem>>, vector<2x128xf32>
    tpu.vector_store %arg4[%c0_3, %c0_4], %5 {strides = array<i32>} : memref<2x128xf32, #tpu.memory_space<vmem>>, vector<2x128xf32>,
    return
  }
  func.func @transform_0(%arg0: i32, %arg1: i32) -> (i32, i32) {
    %c0_i32 = arith.constant 0 : i32
    return %arg0, %arg1 : i32, i32
  }
  func.func @transform_1(%arg0: i32, %arg1: i32) -> (i32, i32) {
    %c0_i32 = arith.constant 0 : i32
    %c0_i32_0 = arith.constant 0 : i32
    return %c0_i32, %arg1 : i32, i32
  }
  func.func @transform_2(%arg0: i32, %arg1: i32) -> (i32, i32) {
    %c0_i32 = arith.constant 0 : i32
    return %arg0, %arg1 : i32, i32
  }
}

</mosaic_0001>

<llo_original>
// kernel: positional_encoder.1
$region0: #{positional_encoder.1}
  #allocation0 [shape = 'u32[]', space=smem, size = 0x4, offset = 0x4, fixed_abs, tag = 'smem constant byte address 0x4 - core index']
  #allocation1 [shape = 'u32[144,128]{1,0:T(1,128)}', space=vmem, size = 0x12000, scoped, tag = 'internal scratch']
  %s0 = inlined_call_operand.vmem [shape: f32[2,256], index: 0, kind: input, shape index: {}]
  %s1 = inlined_call_operand.vmem [shape: f32[1,256], index: 1, kind: input, shape index: {}]
  %s2 = inlined_call_operand.vmem [shape: f32[2,256], index: 2, kind: output, shape index: {}]
  %s3 = sld [smem:[#allocation0]]
  $region41: #{positional_encoder.1} parent=0
    _
  %s5 = ssub.s32 1, %s3
  %s6 = scalar_select 0, %s5, %s3
  loop: start=0, step=1, limit=4
  $region2: #{positional_encoder.1} parent=0 // loop_pre_header
    _
  $region3: #{positional_encoder.1} parent=0 // loop_header
    %s8 = sphi 0, %s12
    %p9 = scmp.ge.s32.totalorder %s8, 4
    %s15 = sphi 0, %s27
    %s16 = sphi 0, %s23
    %s17 = sphi 0, %s15
    %s18 = sphi 0, %s16
    %s19 = sphi 0, %s17
    %s20 = sphi 0, %s18
    %s32 = sphi 0, %s34
    %s35 = sphi 0, %s32
    %s36 = sphi 0, %s35
    %s52 = sphi 0, %s36
    %s58 = sphi 0, %s60
    %s61 = sphi 0, %s58
    %s62 = sphi 0, %s61
    %s78 = sphi 0, %s62
    %s86 = sphi 0, %s88
    %s89 = sphi 0, %s86
    %s90 = sphi 0, %s89
    %s106 = sphi 0, %s90
  $region4: #{positional_encoder.1} parent=0 // loop_header_branch
    %11 = sbr.rel (%p9) target = $region8
  $region5: #{positional_encoder.1} parent=0 // loop_body
    %s13 = ssub.s32 %s8, 1
    %s14 = ssub.s32 %s8, 2
    %s21 = sadd.s32 1, %s16
    %p22 = scmp.ge.s32.totalorder %s21, 2
    %s23 = scalar_select %p22, 0, %s21
    %s24 = sadd.s32 1, %s15
    %s25 = scalar_select %p22, %s24, %s15
    %p26 = scmp.ge.s32.totalorder %s25, 1
    %s27 = scalar_select %p26, 0, %s25
    %s28 = ssub.s32 %s15, %s27
    %s29 = ssub.s32 %s16, %s23
    %s30 = sor.u32 %s28, %s29
    %p31 = scmp.eq.s32.totalorder %s30, 0
    %s33 = sadd.s32 %s32, 1
    %s34 = scalar_select %p31, %s32, %s33
    %p37 = pneg %p31
    %p38 = scmp.eq.s32.totalorder %s8, 1
    %p39 = por %p37, %p38
    %p40 = scmp.ne.s32.totalorder %s32, %s35
    %p41 = scmp.eq.s32.totalorder %s8, 0
    %p42 = por %p40, %p41
    %p43 = scmp.ne.s32.totalorder %s32, %s35
    %p44 = scmp.eq.s32.totalorder %s13, 1
    %p45 = por %p43, %p44
    %p46 = scmp.ne.s32.totalorder %s35, %s36
    %p47 = scmp.eq.s32.totalorder %s13, 0
    %p48 = por %p46, %p47
    %p49 = scmp.ne.s32.totalorder %s35, %s36
    %p50 = scmp.eq.s32.totalorder %s14, 1
    %p51 = por %p49, %p50
    %p53 = scmp.ne.s32.totalorder %s36, %s52
    %p54 = scmp.eq.s32.totalorder %s14, 0
    %p55 = por %p53, %p54
    %s56 = ssub.s32 %s16, %s23
    %p57 = scmp.eq.s32.totalorder %s56, 0
    %s59 = sadd.s32 %s58, 1
    %s60 = scalar_select %p57, %s58, %s59
    %p63 = pneg %p57
    %p64 = scmp.eq.s32.totalorder %s8, 1
    %p65 = por %p63, %p64
    %p66 = scmp.ne.s32.totalorder %s58, %s61
    %p67 = scmp.eq.s32.totalorder %s8, 0
    %p68 = por %p66, %p67
    %p69 = scmp.ne.s32.totalorder %s58, %s61
    %p70 = scmp.eq.s32.totalorder %s13, 1
    %p71 = por %p69, %p70
    %p72 = scmp.ne.s32.totalorder %s61, %s62
    %p73 = scmp.eq.s32.totalorder %s13, 0
    %p74 = por %p72, %p73
    %p75 = scmp.ne.s32.totalorder %s61, %s62
    %p76 = scmp.eq.s32.totalorder %s14, 1
    %p77 = por %p75, %p76
    %p79 = scmp.ne.s32.totalorder %s62, %s78
    %p80 = scmp.eq.s32.totalorder %s14, 0
    %p81 = por %p79, %p80
    %s82 = ssub.s32 %s15, %s27
    %s83 = ssub.s32 %s16, %s23
    %s84 = sor.u32 %s82, %s83
    %p85 = scmp.eq.s32.totalorder %s84, 0
    %s87 = sadd.s32 %s86, 1
    %s88 = scalar_select %p85, %s86, %s87
    %p91 = pneg %p85
    %p92 = scmp.eq.s32.totalorder %s8, 1
    %p93 = por %p91, %p92
    %p94 = scmp.ne.s32.totalorder %s86, %s89
    %p95 = scmp.eq.s32.totalorder %s8, 0
    %p96 = por %p94, %p95
    %p97 = scmp.ne.s32.totalorder %s86, %s89
    %p98 = scmp.eq.s32.totalorder %s13, 1
    %p99 = por %p97, %p98
    %p100 = scmp.ne.s32.totalorder %s89, %s90
    %p101 = scmp.eq.s32.totalorder %s13, 0
    %p102 = por %p100, %p101
    %p103 = scmp.ne.s32.totalorder %s89, %s90
    %p104 = scmp.eq.s32.totalorder %s14, 1
    %p105 = por %p103, %p104
    %p107 = scmp.ne.s32.totalorder %s90, %s106
    %p108 = scmp.eq.s32.totalorder %s14, 0
    %p109 = por %p107, %p108
    %p110 = scmp.le.s32.totalorder 1, %s8
    %p111 = scmp.lt.s32.totalorder %s8, 3
    %p112 = pnand %p110, %p111
    %p113 = pneg %p112
    // Predicated region
    $region9: #{positional_encoder.1} parent=5 // pred_check
      _
    $region10: #{positional_encoder.1} parent=5 // pred_check_branch
      %115 = sbr.rel (%p112) target = $region12
    $region11: #{positional_encoder.1} parent=5 // pred_region
      %s116 = ssub.s32 %s8, 1
    $region12: #{positional_encoder.1} parent=5 // pred_fallthru
      _
    %p117 = scmp.lt.s32.totalorder %s8, 2
    // Predicated region
    $region13: #{positional_encoder.1} parent=5 // pred_check
      %p118 = pneg %p117
    $region14: #{positional_encoder.1} parent=5 // pred_check_branch
      %120 = sbr.rel (%p118) target = $region16
    $region15: #{positional_encoder.1} parent=5 // pred_region
      // Predicated region
      $region17: #{positional_encoder.1} parent=15 // pred_check
        %p121 = pneg %p42
      $region18: #{positional_encoder.1} parent=15 // pred_check_branch
        %123 = sbr.rel (%p121) target = $region20
      $region19: #{positional_encoder.1} parent=15 // pred_region
        %p124 = scmp.lt.s32.totalorder %s15, 0
        %s125 = scalar_select %p124, %s15, 0
        %p126 = scmp.lt.s32.totalorder %s16, 1
        %s127 = scalar_select %p126, %s16, 1
        %s128 = smul.addr %s125, 2
        %s129 = sadd.s32 %s127, %s128
        %s130 = smul.addr %s129, 2
        %s131 = scalar_lea.vmem %s0, %s130
      $region20: #{positional_encoder.1} parent=15 // pred_fallthru
        _
      // Predicated region
      $region21: #{positional_encoder.1} parent=15 // pred_check
        %p132 = pneg %p68
      $region22: #{positional_encoder.1} parent=15 // pred_check_branch
        %134 = sbr.rel (%p132) target = $region24
      $region23: #{positional_encoder.1} parent=15 // pred_region
        %p135 = scmp.lt.s32.totalorder %s16, 1
        %s136 = scalar_select %p135, %s16, 1
        %s137 = scalar_lea.vmem %s1, %s136
      $region24: #{positional_encoder.1} parent=15 // pred_fallthru
        _
    $region16: #{positional_encoder.1} parent=5 // pred_fallthru
      _
    %p138 = scmp.le.s32.totalorder 1, %s8
    %p139 = scmp.lt.s32.totalorder %s8, 3
    %p140 = pnand %p138, %p139
    %p141 = pneg %p140
    // Predicated region
    $region25: #{positional_encoder.1} parent=5 // pred_check
      _
    $region26: #{positional_encoder.1} parent=5 // pred_check_branch
      %143 = sbr.rel (%p140) target = $region28
    $region27: #{positional_encoder.1} parent=5 // pred_region
      %s144 = ssub.s32 %s8, 1
      %p145 = scmp.lt.s32.totalorder %s17, 0
      %s146 = scalar_select %p145, %s17, 0
      %p147 = scmp.lt.s32.totalorder %s18, 1
      %s148 = scalar_select %p147, %s18, 1
      %s149 = smul.addr %s146, 2
      %s150 = sadd.s32 %s148, %s149
      %s151 = smul.addr %s150, 2
      %s152 = scalar_lea.vmem %s0, %s151
      %p153 = pneg %p48
      %p154 = pneg %p45
      %p155 = scmp.lt.s32.totalorder %s18, 1
      %s156 = scalar_select %p155, %s18, 1
      %s157 = scalar_lea.vmem %s1, %s156
      %p158 = pneg %p74
      %p159 = pneg %p71
      %p160 = pneg %p102
      %p161 = pneg %p99
      %p162 = scmp.lt.s32.totalorder %s17, 0
      %s163 = scalar_select %p162, %s17, 0
      %p164 = scmp.lt.s32.totalorder %s18, 1
      %s165 = scalar_select %p164, %s18, 1
      %s166 = smul.addr %s163, 2
      %s167 = sadd.s32 %s165, %s166
      %s168 = smul.addr %s167, 2
      %s169 = scalar_lea.vmem %s2, %s168
      %p170 = scmp.lt.s32.totalorder %s17, 0
      %s171 = scalar_select %p170, %s17, 0
      %p172 = scmp.lt.s32.totalorder %s18, 1
      %s173 = scalar_select %p172, %s18, 1
      %s174 = smul.addr %s171, 2
      %s175 = sadd.s32 %s173, %s174
      %s176 = smul.addr %s175, 2
      %s177 = scalar_lea.vmem %s0, %s176
      %p178 = scmp.lt.s32.totalorder %s18, 1
      %s179 = scalar_select %p178, %s18, 1
      %s180 = scalar_lea.vmem %s1, %s179
      %p181 = scmp.lt.s32.totalorder %s17, 0
      %s182 = scalar_select %p181, %s17, 0
      %p183 = scmp.lt.s32.totalorder %s18, 1
      %s184 = scalar_select %p183, %s18, 1
      %s185 = smul.addr %s182, 2
      %s186 = sadd.s32 %s184, %s185
      %s187 = smul.addr %s186, 2
      %s188 = scalar_lea.vmem %s2, %s187
      %v189 = vld [vmem:[%s177] sm:$0x3]
      %v190 = vmul.f32 %v189, 5.656854
      %v191 = vld [vmem:[%s180] sm:$0x1]
      %v193 = vlaneseq
      %v194 = vshrl.u32 %v193, 7
      %v195 = vsub.s32 0, %v194
      %v196 = vrot.slane %v191, %v195
      %v198 = vadd.f32 %v190, %v196
      %199 = vst [vmem:[%s188] sm:$0x3] %v198
      %p200 = scmp.lt.s32.totalorder %s17, 0
      %s201 = scalar_select %p200, %s17, 0
      %p202 = scmp.lt.s32.totalorder %s18, 1
      %s203 = scalar_select %p202, %s18, 1
      %s204 = smul.addr %s201, 2
      %s205 = sadd.s32 %s203, %s204
      %s206 = smul.addr %s205, 2
      %s207 = scalar_lea.vmem %s2, %s206
      // Predicated region
      $region29: #{positional_encoder.1} parent=27 // pred_check
        %p208 = pneg %p99
      $region30: #{positional_encoder.1} parent=27 // pred_check_branch
        %210 = sbr.rel (%p208) target = $region32
      $region31: #{positional_encoder.1} parent=27 // pred_region
        _
      $region32: #{positional_encoder.1} parent=27 // pred_fallthru
        _
    $region28: #{positional_encoder.1} parent=5 // pred_fallthru
      _
    %p211 = scmp.le.s32.totalorder 2, %s8
    // Predicated region
    $region33: #{positional_encoder.1} parent=5 // pred_check
      %p212 = pneg %p211
    $region34: #{positional_encoder.1} parent=5 // pred_check_branch
      %214 = sbr.rel (%p212) target = $region36
    $region35: #{positional_encoder.1} parent=5 // pred_region
      %s215 = ssub.s32 %s8, 2
      // Predicated region
      $region37: #{positional_encoder.1} parent=35 // pred_check
        %p216 = pneg %p105
      $region38: #{positional_encoder.1} parent=35 // pred_check_branch
        %218 = sbr.rel (%p216) target = $region40
      $region39: #{positional_encoder.1} parent=35 // pred_region
        %p219 = scmp.lt.s32.totalorder %s19, 0
        %s220 = scalar_select %p219, %s19, 0
        %p221 = scmp.lt.s32.totalorder %s20, 1
        %s222 = scalar_select %p221, %s20, 1
        %s223 = smul.addr %s220, 2
        %s224 = sadd.s32 %s222, %s223
        %s225 = smul.addr %s224, 2
        %s226 = scalar_lea.vmem %s2, %s225
      $region40: #{positional_encoder.1} parent=35 // pred_fallthru
        _
    $region36: #{positional_encoder.1} parent=5 // pred_fallthru
      _
  $region6: #{positional_encoder.1} parent=0 // loop_footer
    %s12 = sadd.s32 1, %s8
  $region7: #{positional_encoder.1} parent=0 // loop_footer_branch
    %7 = sbr.rel target = $region3
  $region8: #{positional_encoder.1} parent=0 // loop_exit
    _

</llo_original>
